<compile_context>
chip_gen: v5e
topology: v5e:2x2
jax: 0.10.0
libtpu: 0.0.40
codegen_flags: <defaults>
</compile_context>

<pallas_src>
import functools

import jax
import jax.numpy as jnp
from jax import lax
from jax.experimental import pallas as pl
from jax.experimental.pallas import tpu as pltpu


_MAX_TILE_R = 2048                 # rays per grid step (multiple of 8)
_VMEM_LIMIT_BYTES = 32 * 1024 * 1024


def _sublane_fold(x):
    """(tile_r, VD) -> (8, VD) partial sum via pure VPU adds (no cross-lane work)."""
    tile_r, vd = x.shape
    return x.reshape(tile_r // 8, 8, vd).sum(axis=0)


def _l1_sum_kernel(n_rays, tile_r, a_ref, b_ref, acc_ref):
    """Accumulate sum(|a - b|) over the valid rows of this tile into an (8, VD) partial."""
    t = pl.program_id(0)
    nt = pl.num_programs(0)

    @pl.when(t == 0)
    def _():
        acc_ref[...] = jnp.zeros_like(acc_ref)

    # Cast in-kernel (inputs stay in native dtype in HBM); hides under the DMA.
    diff = a_ref[...].astype(jnp.float32) - b_ref[...].astype(jnp.float32)
    contrib = jnp.abs(diff)                                          # (tile_r, VD)

    has_tail = (n_rays % tile_r) != 0   # static Python bool

    if has_tail:
        # Only the final tile has padded remainder rows -> mask only there.
        @pl.when(t == nt - 1)
        def _():
            rows = t * tile_r + lax.broadcasted_iota(jnp.int32, (tile_r, 1), 0)
            valid = rows < n_rays                                    # (tile_r, 1)
            masked = jnp.where(valid, contrib, 0.0)                  # select kills garbage
            acc_ref[...] += _sublane_fold(masked)

        @pl.when(t != nt - 1)
        def _():
            acc_ref[...] += _sublane_fold(contrib)
    else:
        acc_ref[...] += _sublane_fold(contrib)


def _masked_sq_kernel(n_rays, tile_r, a_ref, b_ref, m_ref, num_ref):
    """Accumulate sum((a-b)^2 * m) partials for the masked branch (sum(m) done in wrapper)."""
    t = pl.program_id(0)
    nt = pl.num_programs(0)

    @pl.when(t == 0)
    def _():
        num_ref[...] = jnp.zeros_like(num_ref)

    a = a_ref[...].astype(jnp.float32)
    b = b_ref[...].astype(jnp.float32)
    d = a - b
    sq = d * d                                                       # (tile_r, VD)
    m = m_ref[...].astype(jnp.float32)                               # (tile_r, 1)
    weighted = sq * m                                                # broadcast over lanes

    has_tail = (n_rays % tile_r) != 0   # static Python bool

    if has_tail:
        @pl.when(t == nt - 1)
        def _():
            rows = t * tile_r + lax.broadcasted_iota(jnp.int32, (tile_r, 1), 0)
            valid = rows < n_rays                                    # (tile_r, 1)
            masked = jnp.where(valid, weighted, 0.0)                 # select kills NaN/garbage
            num_ref[...] += _sublane_fold(masked)

        @pl.when(t != nt - 1)
        def _():
            num_ref[...] += _sublane_fold(weighted)
    else:
        num_ref[...] += _sublane_fold(weighted)


def feature_metric_loss(target_rgb_feat, nearby_view_rgb_feat, mask=None):
    """target/nearby: [n_rays, n_samples=1, n_views+1, d+3]; mask: [1, n_rays] or None."""
    R, S, V, D = target_rgb_feat.shape
    assert S == 1, "n_samples must be 1 (as in the PyTorch module)"
    VD = V * D
    a = target_rgb_feat.reshape(R, VD)        # native dtype, no host-side cast
    b = nearby_view_rgb_feat.reshape(R, VD)

    tile_r = min(_MAX_TILE_R, 8 * pl.cdiv(R, 8))     # multiple of 8, capped for VMEM
    nt = pl.cdiv(R, tile_r)                          # number of ray tiles
    grid = (nt,)

    feat_spec = pl.BlockSpec((tile_r, VD), lambda t: (t, 0))
    part_spec = pl.BlockSpec((8, VD), lambda t: (0, 0))
    cparams = pltpu.CompilerParams(
        dimension_semantics=("arbitrary",),          # output accumulator across this axis
        vmem_limit_bytes=_VMEM_LIMIT_BYTES,
    )

    if mask is None:
        partials = pl.pallas_call(
            functools.partial(_l1_sum_kernel, R, tile_r),
            grid=grid,
            in_specs=[feat_spec, feat_spec],
            out_specs=part_spec,
            out_shape=jax.ShapeDtypeStruct((8, VD), jnp.float32),
            compiler_params=cparams,
        )(a, b)
        # single cross-lane reduce + division: tiny epilogue in the wrapper
        return jnp.sum(partials) / float(R * V * D)

    # torch: mask [1, R] -> repeat/permute -> [R, 1, 1]; here the per-ray mask is [R, 1].
    m = jnp.asarray(mask).reshape(R, 1).astype(jnp.float32)
    mask_spec = pl.BlockSpec((tile_r, 1), lambda t: (t, 0))

    num_p = pl.pallas_call(
        functools.partial(_masked_sq_kernel, R, tile_r),
        grid=grid,
        in_specs=[feat_spec, feat_spec, mask_spec],
        out_specs=part_spec,
        out_shape=jax.ShapeDtypeStruct((8, VD), jnp.float32),
        compiler_params=cparams,
    )(a, b, m)
    # sum(mask) is an R-element reduce: negligible as a wrapper XLA op.
    return jnp.sum(num_p) / (jnp.sum(m) * float(V * D) + 1e-6)


def _reference(target, nearby, mask=None):
    target = target.astype(jnp.float32)
    nearby = nearby.astype(jnp.float32)
    if mask is None:
        return jnp.mean(jnp.abs(nearby - target))
    R = target.shape[0]
    V, D = target.shape[-2], target.shape[-1]
    fd2 = ((target - nearby) ** 2).squeeze(1)                 # [R, V, D]
    m3 = jnp.asarray(mask).astype(jnp.float32).reshape(R, 1, 1)
    return jnp.sum(fd2 * m3) / (jnp.sum(m3[:, :, 0]) * V * D + 1e-6)


if __name__ == "__main__":
    key = jax.random.PRNGKey(0)
    k1, k2, k3, k4, k5, k6, k7, k8, k9 = jax.random.split(key, 9)

    # Case 1: lane-aligned shapes, f32 — n_rays=64, n_samples=1, n_views+1=4, d+3=32 (VD=128)
    R, V, D = 64, 4, 32
    target = jax.random.normal(k1, (R, 1, V, D), dtype=jnp.float32)
    nearby = jax.random.normal(k2, (R, 1, V, D), dtype=jnp.float32)
    mask = (jax.random.uniform(k3, (1, R)) > 0.3).astype(jnp.float32)

    loss_unmasked = feature_metric_loss(target, nearby)
    loss_masked = feature_metric_loss(target, nearby, mask)
    jax.block_until_ready((loss_unmasked, loss_masked))
    assert jnp.allclose(loss_unmasked, _reference(target, nearby), rtol=1e-5, atol=1e-6)
    assert jnp.allclose(loss_masked, _reference(target, nearby, mask), rtol=1e-5, atol=1e-6)

    # Case 2: ragged ray count + bf16 features (remainder masking + in-kernel cast)
    R2 = 100
    target2 = jax.random.normal(k4, (R2, 1, V, D), dtype=jnp.bfloat16)
    nearby2 = jax.random.normal(k5, (R2, 1, V, D), dtype=jnp.bfloat16)
    mask2 = (jax.random.uniform(k6, (1, R2)) > 0.5).astype(jnp.float32)

    loss2_unmasked = feature_metric_loss(target2, nearby2)
    loss2_masked = feature_metric_loss(target2, nearby2, mask2)
    jax.block_until_ready((loss2_unmasked, loss2_masked))
    assert jnp.allclose(loss2_unmasked, _reference(target2, nearby2), rtol=1e-4, atol=1e-5)
    assert jnp.allclose(loss2_masked, _reference(target2, nearby2, mask2), rtol=1e-4, atol=1e-5)

    # Case 3: multi-tile accumulation + tail tile (R > TILE_R, not a multiple of it)
    R3 = 5000
    target3 = jax.random.normal(k7, (R3, 1, V, D), dtype=jnp.float32)
    nearby3 = jax.random.normal(k8, (R3, 1, V, D), dtype=jnp.float32)
    mask3 = (jax.random.uniform(k9, (1, R3)) > 0.4).astype(jnp.float32)

    loss3_unmasked = feature_metric_loss(target3, nearby3)
    loss3_masked = feature_metric_loss(target3, nearby3, mask3)
    jax.block_until_ready((loss3_unmasked, loss3_masked))
    assert jnp.allclose(loss3_unmasked, _reference(target3, nearby3), rtol=1e-5, atol=1e-6)
    assert jnp.allclose(loss3_masked, _reference(target3, nearby3, mask3), rtol=1e-5, atol=1e-6)

    print("KERNEL_OK")
</pallas_src>

<mosaic_0001>
module attributes {stable_mosaic.version = 11 : i64} {
  func.func @_l1_sum_kernel(%arg0: i32, %arg1: memref<64x128xf32, #tpu.memory_space<vmem>>, %arg2: memref<64x128xf32, #tpu.memory_space<vmem>>, %arg3: memref<8x128xf32, #tpu.memory_space<vmem>>) attributes {dimension_semantics = [#tpu.dimension_semantics<arbitrary>], iteration_bounds = array<i64: 1>, scalar_prefetch = 0 : i64, scratch_operands = 0 : i64, tpu.core_type = #tpu.core_type<tc>, window_params = [{transform_indices = @transform_0, window_bounds = array<i64: 64, 128>}, {transform_indices = @transform_1, window_bounds = array<i64: 64, 128>}, {pipeline_mode = #tpu.pipeline_mode<synchronous>, transform_indices = @transform_2, window_bounds = array<i64: 8, 128>}]} {
    %c0_i32 = arith.constant 0 : i32
    %0 = arith.cmpi eq, %arg0, %c0_i32 : i32
    %1 = arith.extui %0 : i1 to i32
    %c0_i32_0 = arith.constant 0 : i32
    %2 = arith.cmpi ne, %1, %c0_i32_0 : i32
    scf.if %2 {
      %cst_8 = arith.constant 0.000000e+00 : f32
      %12 = vector.broadcast %cst_8 : f32 to vector<8x128xf32>
      %c0_9 = arith.constant 0 : index
      %c0_10 = arith.constant 0 : index
      %13 = vector.load %arg3[%c0_9, %c0_10] : memref<8x128xf32, #tpu.memory_space<vmem>>, vector<8x128xf32>
      tpu.vector_store %arg3[%c0_9, %c0_10], %12 {strides = array<i32>} : memref<8x128xf32, #tpu.memory_space<vmem>>, vector<8x128xf32>,
    } else {
    }
    %c0 = arith.constant 0 : index
    %c0_1 = arith.constant 0 : index
    %3 = vector.load %arg1[%c0, %c0_1] : memref<64x128xf32, #tpu.memory_space<vmem>>, vector<64x128xf32>
    %c0_2 = arith.constant 0 : index
    %c0_3 = arith.constant 0 : index
    %4 = vector.load %arg2[%c0_2, %c0_3] : memref<64x128xf32, #tpu.memory_space<vmem>>, vector<64x128xf32>
    %5 = arith.subf %3, %4 : vector<64x128xf32>
    %6 = math.absf %5 : vector<64x128xf32>
    %c0_4 = arith.constant 0 : index
    %c0_5 = arith.constant 0 : index
    %7 = vector.load %arg3[%c0_4, %c0_5] : memref<8x128xf32, #tpu.memory_space<vmem>>, vector<8x128xf32>
    %8 = vector.shape_cast %6 : vector<64x128xf32> to vector<8x8x128xf32>
    %cst = arith.constant dense<0.000000e+00> : vector<8x128xf32>
    %9 = vector.multi_reduction <add>, %8, %cst [0] : vector<8x8x128xf32> to vector<8x128xf32>
    %10 = arith.addf %7, %9 : vector<8x128xf32>
    %c0_6 = arith.constant 0 : index
    %c0_7 = arith.constant 0 : index
    %11 = vector.load %arg3[%c0_6, %c0_7] : memref<8x128xf32, #tpu.memory_space<vmem>>, vector<8x128xf32>
    tpu.vector_store %arg3[%c0_6, %c0_7], %10 {strides = array<i32>} : memref<8x128xf32, #tpu.memory_space<vmem>>, vector<8x128xf32>,
    return
  }
  func.func @transform_0(%arg0: i32) -> (i32, i32) {
    %c0_i32 = arith.constant 0 : i32
    %c0_i32_0 = arith.constant 0 : i32
    return %arg0, %c0_i32 : i32, i32
  }
  func.func @transform_1(%arg0: i32) -> (i32, i32) {
    %c0_i32 = arith.constant 0 : i32
    %c0_i32_0 = arith.constant 0 : i32
    return %arg0, %c0_i32 : i32, i32
  }
  func.func @transform_2(%arg0: i32) -> (i32, i32) {
    %c0_i32 = arith.constant 0 : i32
    %c0_i32_0 = arith.constant 0 : i32
    %c0_i32_1 = arith.constant 0 : i32
    return %c0_i32, %c0_i32_0 : i32, i32
  }
}

</mosaic_0001>

<llo_original>
// kernel: tpu_custom_call.1
$region0: #{tpu_custom_call.1}
  #allocation0 [shape = 'u32[]', space=smem, size = 0x4, offset = 0x4, fixed_abs, tag = 'smem constant byte address 0x4 - core index']
  #allocation1 [shape = 'u32[72,128]{1,0:T(1,128)}', space=vmem, size = 0x9000, scoped, tag = 'internal scratch']
  %s0 = inlined_call_operand.hbm [shape: f32[64,128], index: 0, kind: input, shape index: {}]
  %s1 = inlined_call_operand.hbm [shape: f32[64,128], index: 1, kind: input, shape index: {}]
  %s2 = inlined_call_operand.hbm [shape: f32[8,128], index: 2, kind: output, shape index: {}]
  %s3 = sld [smem:[#allocation0]]
  $region30: #{tpu_custom_call.1} parent=0
    _
  %s5 = ssub.s32 1, %s3
  %s6 = scalar_select 0, %s5, %s3
  $region1: #{tpu_custom_call.1} parent=0
    #allocation2 [shape = 'u8[32768]{0}', space=vmem, size = 0x8000, scoped, tag = 'input window, operand 0, single buffered']
    #allocation3 [shape = 's32[1]{0}', space=sflag, size = 0x4, scoped, tag = 'scoped memory for tpu_custom_call.1']
    #allocation4 [shape = 's32[1]{0}', space=sflag, size = 0x4, scoped, tag = 'scoped memory for tpu_custom_call.1']
    #allocation5 [shape = 'u8[32768]{0}', space=vmem, size = 0x8000, scoped, tag = 'input window, operand 1, single buffered']
    #allocation6 [shape = 's32[1]{0}', space=sflag, size = 0x4, scoped, tag = 'scoped memory for tpu_custom_call.1']
    #allocation7 [shape = 'u8[4096]{0}', space=vmem, size = 0x1000, scoped, tag = 'output window, operand 0, single buffered']
    %7 = vsyncpa [#allocation3], 0
    %8 = vsyncpa [#allocation6], 0
    %9 = vsyncpa [#allocation4], 0
    // Predicated region
    $region2: #{tpu_custom_call.1} parent=1 // pred_check
      _
    $region3: #{tpu_custom_call.1} parent=1 // pred_check_branch
      %11 = sbr.rel (0) target = $region5
    $region4: #{tpu_custom_call.1} parent=1 // pred_region
      %13 = vsyncadd [#allocation3], 0
      %s14 = sshll.u32 %s0, 4
      %s15 = int_to_ptr.hbm [resolvable:$true] %s14
      %s16 = sshll.u32 [#allocation2], 4
      %s17 = int_to_ptr.vmem [resolvable:$true] %s16
      %22 = dma.hbm_to_vmem [thread:$0]  %s15, 1024, %s17, [#allocation3], 128, 128, 8
    $region5: #{tpu_custom_call.1} parent=1 // pred_fallthru
      _
    // Predicated region
    $region6: #{tpu_custom_call.1} parent=1 // pred_check
      _
    $region7: #{tpu_custom_call.1} parent=1 // pred_check_branch
      %24 = sbr.rel (0) target = $region9
    $region8: #{tpu_custom_call.1} parent=1 // pred_region
      %26 = vsyncadd [#allocation6], 0
      %s27 = sshll.u32 %s1, 4
      %s28 = int_to_ptr.hbm [resolvable:$true] %s27
      %s29 = sshll.u32 [#allocation5], 4
      %s30 = int_to_ptr.vmem [resolvable:$true] %s29
      %35 = dma.hbm_to_vmem [thread:$0]  %s28, 1024, %s30, [#allocation6], 128, 128, 8
    $region9: #{tpu_custom_call.1} parent=1 // pred_fallthru
      _
    // Predicated region
    $region10: #{tpu_custom_call.1} parent=1 // pred_check
      _
    $region11: #{tpu_custom_call.1} parent=1 // pred_check_branch
      %37 = sbr.rel (0) target = $region13
    $region12: #{tpu_custom_call.1} parent=1 // pred_region
      %39 = dma.done [#allocation3], 1024
    $region13: #{tpu_custom_call.1} parent=1 // pred_fallthru
      _
    // Predicated region
    $region14: #{tpu_custom_call.1} parent=1 // pred_check
      _
    $region15: #{tpu_custom_call.1} parent=1 // pred_check_branch
      %41 = sbr.rel (0) target = $region17
    $region16: #{tpu_custom_call.1} parent=1 // pred_region
      %43 = dma.done [#allocation6], 1024
    $region17: #{tpu_custom_call.1} parent=1 // pred_fallthru
      _
    %p44 = scmp.eq.s32.totalorder 0, 0
    // Predicated region
    $region18: #{tpu_custom_call.1} parent=1 // pred_check
      %p45 = pneg %p44
    $region19: #{tpu_custom_call.1} parent=1 // pred_check_branch
      %47 = sbr.rel (%p45) target = $region21
    $region20: #{tpu_custom_call.1} parent=1 // pred_region
      %48 = vst [vmem:[#allocation7] sm:$0xff] 0.0
    $region21: #{tpu_custom_call.1} parent=1 // pred_fallthru
      _
    %v49 = vld [vmem:[#allocation2] sm:$0xff]
    %v50 = vld [vmem:[#allocation2 + $0x8] sm:$0xff]
    %v51 = vld [vmem:[#allocation2 + $0x10] sm:$0xff]
    %v52 = vld [vmem:[#allocation2 + $0x18] sm:$0xff]
    %v53 = vld [vmem:[#allocation2 + $0x20] sm:$0xff]
    %v54 = vld [vmem:[#allocation2 + $0x28] sm:$0xff]
    %v55 = vld [vmem:[#allocation2 + $0x30] sm:$0xff]
    %v56 = vld [vmem:[#allocation2 + $0x38] sm:$0xff]
    %v57 = vld [vmem:[#allocation5] sm:$0xff]
    %v58 = vld [vmem:[#allocation5 + $0x8] sm:$0xff]
    %v59 = vld [vmem:[#allocation5 + $0x10] sm:$0xff]
    %v60 = vld [vmem:[#allocation5 + $0x18] sm:$0xff]
    %v61 = vld [vmem:[#allocation5 + $0x20] sm:$0xff]
    %v62 = vld [vmem:[#allocation5 + $0x28] sm:$0xff]
    %v63 = vld [vmem:[#allocation5 + $0x30] sm:$0xff]
    %v64 = vld [vmem:[#allocation5 + $0x38] sm:$0xff]
    %v65 = vsub.f32 %v49, %v57
    %v66 = vsub.f32 %v50, %v58
    %v67 = vsub.f32 %v51, %v59
    %v68 = vsub.f32 %v52, %v60
    %v69 = vsub.f32 %v53, %v61
    %v70 = vsub.f32 %v54, %v62
    %v71 = vsub.f32 %v55, %v63
    %v72 = vsub.f32 %v56, %v64
    %v73 = vand.u32 2147483647, %v65
    %v74 = vand.u32 2147483647, %v66
    %v75 = vand.u32 2147483647, %v67
    %v76 = vand.u32 2147483647, %v68
    %v77 = vand.u32 2147483647, %v69
    %v78 = vand.u32 2147483647, %v70
    %v79 = vand.u32 2147483647, %v71
    %v80 = vand.u32 2147483647, %v72
    %v81 = vld [vmem:[#allocation7] sm:$0xff]
    %v82 = vadd.f32 %v73, %v74
    %v83 = vadd.f32 %v82, %v75
    %v84 = vadd.f32 %v83, %v76
    %v85 = vadd.f32 %v84, %v77
    %v86 = vadd.f32 %v85, %v78
    %v87 = vadd.f32 %v86, %v79
    %v88 = vadd.f32 %v87, %v80
    %v89 = vadd.f32 %v81, %v88
    %90 = vst [vmem:[#allocation7] sm:$0xff] %v89
    // Predicated region
    $region22: #{tpu_custom_call.1} parent=1 // pred_check
      _
    $region23: #{tpu_custom_call.1} parent=1 // pred_check_branch
      %92 = sbr.rel (0) target = $region25
    $region24: #{tpu_custom_call.1} parent=1 // pred_region
      %94 = vsyncadd [#allocation4], 0
      %s96 = sshll.u32 [#allocation7], 4
      %s97 = int_to_ptr.vmem [resolvable:$true] %s96
      %s98 = sshll.u32 %s2, 4
      %s99 = int_to_ptr.hbm [resolvable:$true] %s98
      %101 = dma.vmem_to_hbm [thread:$0]  %s97, 128, %s99, [#allocation4]
    $region25: #{tpu_custom_call.1} parent=1 // pred_fallthru
      _
    // Predicated region
    $region26: #{tpu_custom_call.1} parent=1 // pred_check
      _
    $region27: #{tpu_custom_call.1} parent=1 // pred_check_branch
      %103 = sbr.rel (0) target = $region29
    $region28: #{tpu_custom_call.1} parent=1 // pred_region
      %105 = dma.done [#allocation4], 128
    $region29: #{tpu_custom_call.1} parent=1 // pred_fallthru
      _
    %106 = vsyncpa [#allocation3], 1
    %107 = vsyncpa [#allocation6], 1
    %108 = vsyncpa [#allocation4], 1

</llo_original>
